<compile_context>
chip_gen: v7x
topology: tpu7x:2x2x1
jax: 0.10.0
libtpu: 0.0.40
codegen_flags: <defaults>
</compile_context>

<pallas_src>
import jax
import jax.numpy as jnp
from jax.experimental import pallas as pl
from jax.experimental.pallas import tpu as pltpu

EPS = 1e-5                     # torch GroupNorm / LayerNorm default eps
VMEM_LIMIT = 64 * 1024 * 1024  # raise scoped VMEM ceiling (esp. v5e 16 MiB default)


def _round_up(x, m):
    return ((x + m - 1) // m) * m


def _gn(x, gamma, beta):
    """GroupNorm with a single group over the last (channel) axis == per-row LN."""
    mean = jnp.mean(x, axis=-1, keepdims=True)
    var = jnp.mean((x - mean) ** 2, axis=-1, keepdims=True)
    return (x - mean) * jax.lax.rsqrt(var + EPS) * gamma + beta


# -----------------------------------------------------------------------------
# meta MLP kernel:  [T, 3*n_map] -> Linear -> LayerNorm -> ReLU -> Linear
# -----------------------------------------------------------------------------
def _meta_kernel(x_ref, w1_ref, b1_ref, g1_ref, be1_ref, w2_ref, b2_ref, o_ref):
    x = x_ref[...]
    h = jnp.dot(x, w1_ref[...], preferred_element_type=jnp.float32) + b1_ref[...]
    h = jnp.maximum(_gn(h, g1_ref[...], be1_ref[...]), 0.0)
    o_ref[...] = jnp.dot(h, w2_ref[...], preferred_element_type=jnp.float32) + b2_ref[...]


def meta_mlp(x, p, tile=256):
    N, c_in = x.shape
    n_out = p["w2"].shape[1]
    tr = min(tile, _round_up(N, 8))
    Np = _round_up(N, tr)
    xp = x if Np == N else jnp.pad(x, ((0, Np - N), (0, 0)))

    full = lambda a: pl.BlockSpec(a.shape, lambda i: (0,) * a.ndim)
    args = (xp, p["w1"], p["b1"], p["g1"], p["be1"], p["w2"], p["b2"])
    out = pl.pallas_call(
        _meta_kernel,
        out_shape=jax.ShapeDtypeStruct((Np, n_out), jnp.float32),
        grid=(Np // tr,),
        in_specs=[pl.BlockSpec((tr, c_in), lambda i: (i, 0))]
        + [full(a) for a in args[1:]],
        out_specs=pl.BlockSpec((tr, n_out), lambda i: (i, 0)),
        compiler_params=pltpu.CompilerParams(
            dimension_semantics=("parallel",), vmem_limit_bytes=VMEM_LIMIT),
    )(*args)
    return out[:N]


# -----------------------------------------------------------------------------
# Att kernel (dense masked formulation of the sparse attention block)
# grid = (row_tiles, ctx_tiles); ctx axis is the reduction ("arbitrary") axis.
# -----------------------------------------------------------------------------
def _make_att_kernel(dist_th):
    th2 = float(dist_th) ** 2

    def kernel(agts_ref, actrs_ref, ab_ref,           # row-tiled
               cctrs_t_ref, cb_t_ref, ctxp_ref,       # ctx-tiled
               wd1_ref, wd2_ref, wq_ref, wc1d_ref, wc1q_ref, wc2_ref,
               wagt_ref, wlin_ref, vc_ref, va_ref,    # resident weights
               o_ref,                                  # output (resident over kc)
               acc_ref, qp_ref):                       # VMEM scratch
        kc = pl.program_id(1)
        T, na = agts_ref.shape
        Kc = ctxp_ref.shape[0]
        nc = wd2_ref.shape[0]

        agts = agts_ref[...]                           # [T, na]
        vc = vc_ref[...]                               # [5, nc]: bd1, gd2, bd2, gq, bq
        va = va_ref[...]                               # [6, na]: gc1, bc1, gn_g, gn_b, glin, blin

        # ---- init accumulator and the per-row query projection once --------
        @pl.when(kc == 0)
        def _init():
            acc_ref[...] = jnp.zeros_like(acc_ref)
            q = jnp.dot(agts, wq_ref[...], preferred_element_type=jnp.float32)
            q = jnp.maximum(_gn(q, vc[3:4, :], vc[4:5, :]), 0.0)       # [T, nc]
            qp_ref[...] = jnp.dot(q, wc1q_ref[...],
                                  preferred_element_type=jnp.float32)  # [T, na]

        # ---- pairwise geometry / validity mask, lane-dense [T, Kc] ----------
        dx = actrs_ref[:, 0:1] - cctrs_t_ref[0:1, :]                   # [T, Kc]
        dy = actrs_ref[:, 1:2] - cctrs_t_ref[1:2, :]                   # [T, Kc]
        dist_sq = dx * dx + dy * dy
        same_b = ab_ref[...] == cb_t_ref[...]                          # exact int compare
        mask = jnp.where(jnp.logical_and(dist_sq <= th2, same_b), 1.0, 0.0)

        # ---- dist branch: Linear(2,nc)+b, ReLU, Linear(nc,nc), GN, ReLU ------
        wd1 = wd1_ref[...]                                             # [2, nc]
        d1 = (dx[:, :, None] * wd1[0:1, :].reshape(1, 1, nc)
              + dy[:, :, None] * wd1[1:2, :].reshape(1, 1, nc)
              + vc[0:1, :].reshape(1, 1, nc))                          # [T, Kc, nc]
        d1 = jnp.maximum(d1, 0.0)
        d2 = jnp.dot(d1.reshape(T * Kc, nc), wd2_ref[...],
                     preferred_element_type=jnp.float32)               # flat 2-D matmul
        d2 = jnp.maximum(_gn(d2, vc[1:2, :], vc[2:3, :]), 0.0)         # [T*Kc, nc]

        # ---- ctx fuse: first Linear(3*nc, na) split across the concat pieces
        pre = jnp.dot(d2, wc1d_ref[...],
                      preferred_element_type=jnp.float32).reshape(T, Kc, na)
        pre = pre + qp_ref[...][:, None, :] + ctxp_ref[...][None, :, :]
        c1 = jnp.maximum(_gn(pre, va[0:1, :], va[1:2, :]), 0.0)        # [T, Kc, na]

        # masked aggregation (== sparse index_add_); wc2 is applied after all
        # ctx tiles because  sum_k mask*(c1@wc2) == (sum_k mask*c1) @ wc2.
        acc_ref[...] += jnp.sum(mask[:, :, None] * c1, axis=1)         # [T, na]

        # ---- finalize: wc2, agt Linear, GN, ReLU, Linear, GN, residual, ReLU
        @pl.when(kc == pl.num_programs(1) - 1)
        def _finalize():
            agg = jnp.dot(acc_ref[...], wc2_ref[...],
                          preferred_element_type=jnp.float32)
            a = jnp.dot(agts, wagt_ref[...], preferred_element_type=jnp.float32) + agg
            a = jnp.maximum(_gn(a, va[2:3, :], va[3:4, :]), 0.0)
            out = _gn(jnp.dot(a, wlin_ref[...], preferred_element_type=jnp.float32),
                      va[4:5, :], va[5:6, :])
            o_ref[...] = jnp.maximum(out + agts, 0.0)

    return kernel


def _pack_att_params(p):
    """Pack per-channel vectors into slabs; return weight matrices in kernel order."""
    vc = jnp.concatenate([p["bd1"], p["gd2"], p["bd2"], p["gq"], p["bq"]], axis=0)
    va = jnp.concatenate([p["gc1"], p["bc1"], p["gn_g"], p["gn_b"],
                          p["glin"], p["blin"]], axis=0)
    mats = (p["wd1"], p["wd2"], p["wq"], p["wc1d"], p["wc1q"],
            p["wc2"], p["wagt"], p["wlin"])
    return mats, vc, va


def att_forward(agts, agt_ctrs, agt_b, ctx, ctx_ctrs, ctx_b, p, dist_th,
                tile_rows=128, tile_ctx=128):
    N, na = agts.shape
    NC, nc = ctx.shape

    tr = min(tile_rows, _round_up(N, 8))
    tc = min(tile_ctx, _round_up(NC, 8))
    Np = _round_up(N, tr)
    NCp = _round_up(NC, tc)
    pr, pc = Np - N, NCp - NC

    # row-side (lane nodes) padding; pad batch id -1 never matches any ctx id
    agts_p = jnp.pad(agts, ((0, pr), (0, 0)))
    actrs_p = jnp.pad(agt_ctrs, ((0, pr), (0, 0)))
    ab_p = jnp.pad(agt_b, ((0, pr), (0, 0)), constant_values=-1)

    # ctx-side (actor nodes): hoist the grid-invariant projection ctx @ wc1c,
    # transpose small per-node arrays so the ctx axis is lane-dense in-kernel.
    ctx_proj = jnp.dot(ctx, p["wc1c"], preferred_element_type=jnp.float32)
    ctxp_p = jnp.pad(ctx_proj, ((0, pc), (0, 0)))
    cctrs_t = jnp.pad(ctx_ctrs, ((0, pc), (0, 0))).T                  # [2, NCp]
    cb_t = jnp.pad(ctx_b, ((0, pc), (0, 0)), constant_values=-2).T    # [1, NCp]

    mats, vc, va = _pack_att_params(p)
    kernel = _make_att_kernel(dist_th)
    full = lambda a: pl.BlockSpec(a.shape, lambda i, k: (0,) * a.ndim)

    in_specs = (
        [pl.BlockSpec((tr, na), lambda i, k: (i, 0)),    # agts
         pl.BlockSpec((tr, 2), lambda i, k: (i, 0)),     # agt centers
         pl.BlockSpec((tr, 1), lambda i, k: (i, 0)),     # agt batch ids
         pl.BlockSpec((2, tc), lambda i, k: (0, k)),     # ctx centers (T)
         pl.BlockSpec((1, tc), lambda i, k: (0, k)),     # ctx batch ids (T)
         pl.BlockSpec((tc, na), lambda i, k: (k, 0))]    # ctx @ wc1c
        + [full(m) for m in mats] + [full(vc), full(va)]
    )

    out = pl.pallas_call(
        kernel,
        out_shape=jax.ShapeDtypeStruct((Np, na), jnp.float32),
        grid=(Np // tr, NCp // tc),
        in_specs=in_specs,
        out_specs=pl.BlockSpec((tr, na), lambda i, k: (i, 0)),
        scratch_shapes=[pltpu.VMEM((tr, na), jnp.float32),   # masked-sum accumulator
                        pltpu.VMEM((tr, na), jnp.float32)],  # query projection
        compiler_params=pltpu.CompilerParams(
            dimension_semantics=("parallel", "arbitrary"),
            vmem_limit_bytes=VMEM_LIMIT),
    )(agts_p, actrs_p, ab_p, cctrs_t, cb_t, ctxp_p, *mats, vc, va)
    return out[:N]


# -----------------------------------------------------------------------------
# A2M wrapper (glue: embeddings gather, concat, batch-id bookkeeping)
# -----------------------------------------------------------------------------
def _batch_ids(idcs_list):
    return jnp.concatenate(
        [jnp.full((int(idx.shape[0]), 1), i, jnp.int32)
         for i, idx in enumerate(idcs_list)], axis=0)


def a2m_forward(params, feat, graph, actors, actor_idcs, actor_ctrs, dist_th):
    intersect = graph["intersect"].astype(jnp.int32)
    lane_type = graph["lane_type"].astype(jnp.int32)
    meta = jnp.concatenate(
        [params["intersect_embed"][intersect], params["lane_embed"][lane_type]], axis=1)
    x = jnp.concatenate([feat, meta], axis=1)
    feat = meta_mlp(x, params["meta"])

    lane_ctrs = jnp.concatenate(graph["ctrs"], axis=0).astype(jnp.float32)
    lane_b = _batch_ids(graph["idcs"])
    act_ctrs = jnp.concatenate(actor_ctrs, axis=0).astype(jnp.float32)
    act_b = _batch_ids(actor_idcs)

    for i in range(2):
        feat = att_forward(feat, lane_ctrs, lane_b, actors, act_ctrs, act_b,
                           params["att"][i], dist_th)
    return feat


# -----------------------------------------------------------------------------
# Pure-JAX reference (original un-fused math, untiled) for verification
# -----------------------------------------------------------------------------
def _meta_ref(x, p):
    h = jnp.maximum(_gn(x @ p["w1"] + p["b1"], p["g1"], p["be1"]), 0.0)
    return h @ p["w2"] + p["b2"]


def _att_ref(agts, actrs, ab, ctx, cctrs, cb, p, dist_th):
    d = actrs[:, None, :] - cctrs[None, :, :]
    dist = jnp.sqrt(jnp.sum(d * d, -1))
    mask = ((dist <= dist_th) & (ab[:, 0][:, None] == cb[:, 0][None, :]))
    mask = mask.astype(jnp.float32)[..., None]
    d1 = jax.nn.relu(jnp.einsum("tcd,dn->tcn", d, p["wd1"]) + p["bd1"])
    d2 = jax.nn.relu(_gn(jnp.einsum("tcn,nm->tcm", d1, p["wd2"]), p["gd2"], p["bd2"]))
    q = jax.nn.relu(_gn(agts @ p["wq"], p["gq"], p["bq"]))
    pre = (jnp.einsum("tcn,nm->tcm", d2, p["wc1d"])
           + (q @ p["wc1q"])[:, None, :] + (ctx @ p["wc1c"])[None, :, :])
    c1 = jax.nn.relu(_gn(pre, p["gc1"], p["bc1"]))
    c2 = jnp.einsum("tcm,mk->tck", c1, p["wc2"])
    agg = jnp.sum(mask * c2, axis=1)
    a = jax.nn.relu(_gn(agts @ p["wagt"] + agg, p["gn_g"], p["gn_b"]))
    out = _gn(a @ p["wlin"], p["glin"], p["blin"])
    return jax.nn.relu(out + agts)


def a2m_ref(params, feat, graph, actors, actor_idcs, actor_ctrs, dist_th):
    intersect = graph["intersect"].astype(jnp.int32)
    lane_type = graph["lane_type"].astype(jnp.int32)
    meta = jnp.concatenate(
        [params["intersect_embed"][intersect], params["lane_embed"][lane_type]], axis=1)
    feat = _meta_ref(jnp.concatenate([feat, meta], axis=1), params["meta"])
    lane_ctrs = jnp.concatenate(graph["ctrs"], axis=0).astype(jnp.float32)
    lane_b = _batch_ids(graph["idcs"])
    act_ctrs = jnp.concatenate(actor_ctrs, axis=0).astype(jnp.float32)
    act_b = _batch_ids(actor_idcs)
    for i in range(2):
        feat = _att_ref(feat, lane_ctrs, lane_b, actors, act_ctrs, act_b,
                        params["att"][i], dist_th)
    return feat


# -----------------------------------------------------------------------------
# Deterministic parameter initialization (synthetic; shapes follow the module)
# -----------------------------------------------------------------------------
def init_params(key, n_map, n_actor, intersect_dim, lane_type_dim):
    keys = iter(jax.random.split(key, 128))

    def w(shape, scale=0.1):
        return (scale * jax.random.normal(next(keys), shape)).astype(jnp.float32)

    def gamma(n):
        return (1.0 + 0.1 * jax.random.normal(next(keys), (1, n))).astype(jnp.float32)

    def beta(n):
        return (0.1 * jax.random.normal(next(keys), (1, n))).astype(jnp.float32)

    na, nc = n_map, n_actor
    params = {
        "intersect_embed": w((intersect_dim, n_map)),
        "lane_embed": w((lane_type_dim, n_map)),
        "meta": dict(w1=w((3 * n_map, n_map)), b1=w((1, n_map)),
                     g1=gamma(n_map), be1=beta(n_map),
                     w2=w((n_map, n_map)), b2=w((1, n_map))),
        "att": [],
    }
    for _ in range(2):
        params["att"].append(dict(
            wd1=w((2, nc)), bd1=w((1, nc)),
            wd2=w((nc, nc)), gd2=gamma(nc), bd2=beta(nc),
            wq=w((na, nc)), gq=gamma(nc), bq=beta(nc),
            wc1d=w((nc, na)), wc1q=w((nc, na)), wc1c=w((nc, na)),
            gc1=gamma(na), bc1=beta(na), wc2=w((na, na)),
            wagt=w((na, na)), gn_g=gamma(na), gn_b=beta(na),
            wlin=w((na, na)), glin=gamma(na), blin=beta(na),
        ))
    return params


if __name__ == "__main__":
    config = dict(n_map=32, n_actor=32, intersect_dim=2, lane_type_dim=4,
                  actor2map_dist=6.0)
    key = jax.random.PRNGKey(0)
    kp, kd = jax.random.split(key)
    params = init_params(kp, config["n_map"], config["n_actor"],
                         config["intersect_dim"], config["lane_type_dim"])

    dkeys = jax.random.split(kd, 6)
    # batch of 2: (12, 10) lane nodes / (5, 4) actors -> exercises tile padding
    n_lane, n_act = 22, 9
    feat = jax.random.normal(dkeys[0], (n_lane, config["n_map"]), jnp.float32)
    actors = jax.random.normal(dkeys[1], (n_act, config["n_actor"]), jnp.float32)
    intersect = jax.random.randint(dkeys[2], (n_lane,), 0, config["intersect_dim"])
    lane_type = jax.random.randint(dkeys[3], (n_lane,), 0, config["lane_type_dim"])
    lane_ctrs_all = 10.0 * jax.random.uniform(dkeys[4], (n_lane, 2), jnp.float32)
    actor_ctrs_all = 10.0 * jax.random.uniform(dkeys[5], (n_act, 2), jnp.float32)

    graph = {
        "intersect": intersect,
        "lane_type": lane_type,
        "idcs": [jnp.arange(0, 12), jnp.arange(12, n_lane)],
        "ctrs": [lane_ctrs_all[:12], lane_ctrs_all[12:]],
    }
    actor_idcs = [jnp.arange(0, 5), jnp.arange(5, n_act)]
    actor_ctrs = [actor_ctrs_all[:5], actor_ctrs_all[5:]]

    out = a2m_forward(params, feat, graph, actors, actor_idcs, actor_ctrs,
                      config["actor2map_dist"])
    out = jax.block_until_ready(out)

    ref = a2m_ref(params, feat, graph, actors, actor_idcs, actor_ctrs,
                  config["actor2map_dist"])
    assert out.shape == (n_lane, config["n_map"]) and out.dtype == jnp.float32
    assert bool(jnp.all(jnp.isfinite(out)))
    max_err = float(jnp.max(jnp.abs(out - ref)))
    assert max_err < 1e-3, f"mismatch vs reference: {max_err}"
    print("KERNEL_OK")
</pallas_src>

<mosaic_0001>
module attributes {stable_mosaic.version = 11 : i64} {
  func.func @_meta_kernel(%arg0: i32, %arg1: memref<24x96xf32, #tpu.memory_space<vmem>>, %arg2: memref<96x32xf32, #tpu.memory_space<vmem>>, %arg3: memref<1x32xf32, #tpu.memory_space<vmem>>, %arg4: memref<1x32xf32, #tpu.memory_space<vmem>>, %arg5: memref<1x32xf32, #tpu.memory_space<vmem>>, %arg6: memref<32x32xf32, #tpu.memory_space<vmem>>, %arg7: memref<1x32xf32, #tpu.memory_space<vmem>>, %arg8: memref<24x32xf32, #tpu.memory_space<vmem>>) attributes {dimension_semantics = [#tpu.dimension_semantics<parallel>], iteration_bounds = array<i64: 1>, scalar_prefetch = 0 : i64, scratch_operands = 0 : i64, tpu.core_type = #tpu.core_type<tc>, window_params = [{transform_indices = @transform_0, window_bounds = array<i64: 24, 96>}, {pipeline_mode = #tpu.pipeline_mode<synchronous>, transform_indices = @transform_1, window_bounds = array<i64: 96, 32>}, {pipeline_mode = #tpu.pipeline_mode<synchronous>, transform_indices = @transform_2, window_bounds = array<i64: 1, 32>}, {pipeline_mode = #tpu.pipeline_mode<synchronous>, transform_indices = @transform_3, window_bounds = array<i64: 1, 32>}, {pipeline_mode = #tpu.pipeline_mode<synchronous>, transform_indices = @transform_4, window_bounds = array<i64: 1, 32>}, {pipeline_mode = #tpu.pipeline_mode<synchronous>, transform_indices = @transform_5, window_bounds = array<i64: 32, 32>}, {pipeline_mode = #tpu.pipeline_mode<synchronous>, transform_indices = @transform_6, window_bounds = array<i64: 1, 32>}, {transform_indices = @transform_7, window_bounds = array<i64: 24, 32>}]} {
    %c0 = arith.constant 0 : index
    %c0_0 = arith.constant 0 : index
    %0 = vector.load %arg1[%c0, %c0_0] : memref<24x96xf32, #tpu.memory_space<vmem>>, vector<24x96xf32>
    %c0_1 = arith.constant 0 : index
    %c0_2 = arith.constant 0 : index
    %1 = vector.load %arg2[%c0_1, %c0_2] : memref<96x32xf32, #tpu.memory_space<vmem>>, vector<96x32xf32>
    %cst = arith.constant dense<0.000000e+00> : vector<24x32xf32>
    %2 = tpu.matmul %0, %1, %cst {dimension_numbers = #tpu.dot_dimension_numbers<[1], [0], [0], [1], [0, 0, 1, 1], [], []>} : vector<24x96xf32>, vector<96x32xf32>, vector<24x32xf32> -> vector<24x32xf32>
    %c0_3 = arith.constant 0 : index
    %c0_4 = arith.constant 0 : index
    %3 = vector.load %arg3[%c0_3, %c0_4] : memref<1x32xf32, #tpu.memory_space<vmem>>, vector<1x32xf32>
    %4 = vector.broadcast %3 : vector<1x32xf32> to vector<24x32xf32>
    %5 = arith.addf %2, %4 : vector<24x32xf32>
    %c0_5 = arith.constant 0 : index
    %c0_6 = arith.constant 0 : index
    %6 = vector.load %arg4[%c0_5, %c0_6] : memref<1x32xf32, #tpu.memory_space<vmem>>, vector<1x32xf32>
    %c0_7 = arith.constant 0 : index
    %c0_8 = arith.constant 0 : index
    %7 = vector.load %arg5[%c0_7, %c0_8] : memref<1x32xf32, #tpu.memory_space<vmem>>, vector<1x32xf32>
    %cst_9 = arith.constant dense<0.000000e+00> : vector<24xf32>
    %8 = vector.multi_reduction <add>, %5, %cst_9 [1] : vector<24x32xf32> to vector<24xf32>
    %9 = vector.shape_cast %8 : vector<24xf32> to vector<24x1xf32>
    %cst_10 = arith.constant 3.200000e+01 : f32
    %10 = vector.broadcast %cst_10 : f32 to vector<24x1xf32>
    %11 = arith.divf %9, %10 : vector<24x1xf32>
    %12 = vector.broadcast %11 : vector<24x1xf32> to vector<24x32xf32>
    %13 = arith.subf %5, %12 : vector<24x32xf32>
    %14 = arith.mulf %13, %13 : vector<24x32xf32>
    %cst_11 = arith.constant dense<0.000000e+00> : vector<24xf32>
    %15 = vector.multi_reduction <add>, %14, %cst_11 [1] : vector<24x32xf32> to vector<24xf32>
    %16 = vector.shape_cast %15 : vector<24xf32> to vector<24x1xf32>
    %cst_12 = arith.constant 3.200000e+01 : f32
    %17 = vector.broadcast %cst_12 : f32 to vector<24x1xf32>
    %18 = arith.divf %16, %17 : vector<24x1xf32>
    %19 = vector.broadcast %11 : vector<24x1xf32> to vector<24x32xf32>
    %20 = arith.subf %5, %19 : vector<24x32xf32>
    %cst_13 = arith.constant 9.99999974E-6 : f32
    %21 = vector.broadcast %cst_13 : f32 to vector<24x1xf32>
    %22 = arith.addf %18, %21 : vector<24x1xf32>
    %23 = math.rsqrt %22 : vector<24x1xf32>
    %24 = vector.broadcast %23 : vector<24x1xf32> to vector<24x32xf32>
    %25 = arith.mulf %20, %24 : vector<24x32xf32>
    %26 = vector.broadcast %6 : vector<1x32xf32> to vector<24x32xf32>
    %27 = arith.mulf %25, %26 : vector<24x32xf32>
    %28 = vector.broadcast %7 : vector<1x32xf32> to vector<24x32xf32>
    %29 = arith.addf %27, %28 : vector<24x32xf32>
    %cst_14 = arith.constant 0.000000e+00 : f32
    %30 = vector.broadcast %cst_14 : f32 to vector<24x32xf32>
    %31 = arith.maximumf %29, %30 : vector<24x32xf32>
    %c0_15 = arith.constant 0 : index
    %c0_16 = arith.constant 0 : index
    %32 = vector.load %arg6[%c0_15, %c0_16] : memref<32x32xf32, #tpu.memory_space<vmem>>, vector<32x32xf32>
    %cst_17 = arith.constant dense<0.000000e+00> : vector<24x32xf32>
    %33 = tpu.matmul %31, %32, %cst_17 {dimension_numbers = #tpu.dot_dimension_numbers<[1], [0], [0], [1], [0, 0, 1, 1], [], []>} : vector<24x32xf32>, vector<32x32xf32>, vector<24x32xf32> -> vector<24x32xf32>
    %c0_18 = arith.constant 0 : index
    %c0_19 = arith.constant 0 : index
    %34 = vector.load %arg7[%c0_18, %c0_19] : memref<1x32xf32, #tpu.memory_space<vmem>>, vector<1x32xf32>
    %35 = vector.broadcast %34 : vector<1x32xf32> to vector<24x32xf32>
    %36 = arith.addf %33, %35 : vector<24x32xf32>
    %c0_20 = arith.constant 0 : index
    %c0_21 = arith.constant 0 : index
    %37 = vector.load %arg8[%c0_20, %c0_21] : memref<24x32xf32, #tpu.memory_space<vmem>>, vector<24x32xf32>
    tpu.vector_store %arg8[%c0_20, %c0_21], %36 {strides = array<i32>} : memref<24x32xf32, #tpu.memory_space<vmem>>, vector<24x32xf32>,
    return
  }
  func.func @transform_0(%arg0: i32) -> (i32, i32) {
    %c0_i32 = arith.constant 0 : i32
    %c0_i32_0 = arith.constant 0 : i32
    return %arg0, %c0_i32 : i32, i32
  }
  func.func @transform_1(%arg0: i32) -> (i32, i32) {
    %c0_i32 = arith.constant 0 : i32
    %c0_i32_0 = arith.constant 0 : i32
    %c0_i32_1 = arith.constant 0 : i32
    return %c0_i32, %c0_i32_0 : i32, i32
  }
  func.func @transform_2(%arg0: i32) -> (i32, i32) {
    %c0_i32 = arith.constant 0 : i32
    %c0_i32_0 = arith.constant 0 : i32
    %c0_i32_1 = arith.constant 0 : i32
    return %c0_i32, %c0_i32_0 : i32, i32
  }
  func.func @transform_3(%arg0: i32) -> (i32, i32) {
    %c0_i32 = arith.constant 0 : i32
    %c0_i32_0 = arith.constant 0 : i32
    %c0_i32_1 = arith.constant 0 : i32
    return %c0_i32, %c0_i32_0 : i32, i32
  }
  func.func @transform_4(%arg0: i32) -> (i32, i32) {
    %c0_i32 = arith.constant 0 : i32
    %c0_i32_0 = arith.constant 0 : i32
    %c0_i32_1 = arith.constant 0 : i32
    return %c0_i32, %c0_i32_0 : i32, i32
  }
  func.func @transform_5(%arg0: i32) -> (i32, i32) {
    %c0_i32 = arith.constant 0 : i32
    %c0_i32_0 = arith.constant 0 : i32
    %c0_i32_1 = arith.constant 0 : i32
    return %c0_i32, %c0_i32_0 : i32, i32
  }
  func.func @transform_6(%arg0: i32) -> (i32, i32) {
    %c0_i32 = arith.constant 0 : i32
    %c0_i32_0 = arith.constant 0 : i32
    %c0_i32_1 = arith.constant 0 : i32
    return %c0_i32, %c0_i32_0 : i32, i32
  }
  func.func @transform_7(%arg0: i32) -> (i32, i32) {
    %c0_i32 = arith.constant 0 : i32
    %c0_i32_0 = arith.constant 0 : i32
    return %arg0, %c0_i32 : i32, i32
  }
}

</mosaic_0001>

<llo_original>
// kernel: tpu_custom_call.1
$region0: #{tpu_custom_call.1}
  #allocation0 [shape = 'u32[]', space=smem, size = 0x4, offset = 0x4, fixed_abs, tag = 'smem constant byte address 0x4 - core index']
  #allocation1 [shape = 'u32[144,128]{1,0:T(1,128)}', space=vmem, size = 0x12000, scoped, tag = 'internal scratch']
  %s0 = inlined_call_operand.hbm [shape: f32[24,96], index: 0, kind: input, shape index: {}]
  %s1 = inlined_call_operand.hbm [shape: f32[96,32], index: 1, kind: input, shape index: {}]
  %s2 = inlined_call_operand.hbm [shape: f32[1,32], index: 2, kind: input, shape index: {}]
  %s3 = inlined_call_operand.hbm [shape: f32[1,32], index: 3, kind: input, shape index: {}]
  %s4 = inlined_call_operand.hbm [shape: f32[1,32], index: 4, kind: input, shape index: {}]
  %s5 = inlined_call_operand.hbm [shape: f32[32,32], index: 5, kind: input, shape index: {}]
  %s6 = inlined_call_operand.hbm [shape: f32[1,32], index: 6, kind: input, shape index: {}]
  %s7 = inlined_call_operand.hbm [shape: f32[24,32], index: 7, kind: output, shape index: {}]
  %s8 = sld [smem:[#allocation0]]
  $region66: #{tpu_custom_call.1} parent=0
    _
  %s10 = ssub.s32 1, %s8
  %s11 = scalar_select 0, %s10, %s8
  $region1: #{tpu_custom_call.1} parent=0
    #allocation2 [shape = 'u8[12288]{0}', space=vmem, size = 0x3000, scoped, tag = 'input window, operand 0, single buffered']
    #allocation3 [shape = 's32[1]{0}', space=sflag, size = 0x4, scoped, tag = 'scoped memory for tpu_custom_call.1']
    #allocation4 [shape = 's32[1]{0}', space=sflag, size = 0x4, scoped, tag = 'scoped memory for tpu_custom_call.1']
    #allocation5 [shape = 'u8[49152]{0}', space=vmem, size = 0xc000, scoped, tag = 'input window, operand 1, single buffered']
    #allocation6 [shape = 's32[1]{0}', space=sflag, size = 0x4, scoped, tag = 'scoped memory for tpu_custom_call.1']
    #allocation7 [shape = 'u8[512]{0}', space=vmem, size = 0x400, scoped, tag = 'input window, operand 2, single buffered']
    #allocation8 [shape = 'u8[512]{0}', space=vmem, size = 0x400, scoped, tag = 'input window, operand 3, single buffered']
    #allocation9 [shape = 's32[1]{0}', space=sflag, size = 0x4, scoped, tag = 'scoped memory for tpu_custom_call.1']
    #allocation10 [shape = 'u8[512]{0}', space=vmem, size = 0x400, scoped, tag = 'input window, operand 4, single buffered']
    #allocation11 [shape = 'u8[16384]{0}', space=vmem, size = 0x4000, scoped, tag = 'input window, operand 5, single buffered']
    #allocation12 [shape = 's32[1]{0}', space=sflag, size = 0x4, scoped, tag = 'scoped memory for tpu_custom_call.1']
    #allocation13 [shape = 'u8[512]{0}', space=vmem, size = 0x400, scoped, tag = 'input window, operand 6, single buffered']
    #allocation14 [shape = 'u8[12288]{0}', space=vmem, size = 0x3000, scoped, tag = 'output window, operand 0, single buffered']
    %12 = vsyncpa [#allocation3], 0
    %13 = vsyncpa [#allocation6], 0
    %14 = vsyncpa [#allocation9], 0
    %15 = vsyncpa [#allocation12], 0
    %16 = vsyncpa [#allocation4], 0
    // Predicated region
    $region2: #{tpu_custom_call.1} parent=1 // pred_check
      _
    $region3: #{tpu_custom_call.1} parent=1 // pred_check_branch
      %18 = sbr.rel (0) target = $region5
    $region4: #{tpu_custom_call.1} parent=1 // pred_region
      %s20 = ssub.s32 384, 384
      %21 = vsyncadd [#allocation3], %s20
      %s22 = sshll.u32 [#allocation2], 4
      %s23 = int_to_ptr.vmem [resolvable:$true] %s22
      %28 = dma.hbm_to_vmem [thread:$0]  %s0, 384, %s23, [#allocation3], 128, 128, 8
    $region5: #{tpu_custom_call.1} parent=1 // pred_fallthru
      _
    // Predicated region
    $region6: #{tpu_custom_call.1} parent=1 // pred_check
      _
    $region7: #{tpu_custom_call.1} parent=1 // pred_check_branch
      %30 = sbr.rel (0) target = $region9
    $region8: #{tpu_custom_call.1} parent=1 // pred_region
      %s32 = ssub.s32 1536, 1536
      %33 = vsyncadd [#allocation6], %s32
      %s34 = sshll.u32 [#allocation5], 4
      %s35 = int_to_ptr.vmem [resolvable:$true] %s34
      %40 = dma.hbm_to_vmem [thread:$0]  %s1, 1536, %s35, [#allocation6], 128, 128, 8
    $region9: #{tpu_custom_call.1} parent=1 // pred_fallthru
      _
    // Predicated region
    $region10: #{tpu_custom_call.1} parent=1 // pred_check
      _
    $region11: #{tpu_custom_call.1} parent=1 // pred_check_branch
      %42 = sbr.rel (0) target = $region13
    $region12: #{tpu_custom_call.1} parent=1 // pred_region
      %s44 = ssub.s32 16, 16
      %45 = vsyncadd [#allocation6], %s44
      %s47 = sshll.u32 [#allocation7], 4
      %s48 = int_to_ptr.vmem [resolvable:$true] %s47
      %50 = dma.hbm_to_vmem [thread:$0]  %s2, 16, %s48, [#allocation6]
    $region13: #{tpu_custom_call.1} parent=1 // pred_fallthru
      _
    // Predicated region
    $region14: #{tpu_custom_call.1} parent=1 // pred_check
      _
    $region15: #{tpu_custom_call.1} parent=1 // pred_check_branch
      %52 = sbr.rel (0) target = $region17
    $region16: #{tpu_custom_call.1} parent=1 // pred_region
      %s54 = ssub.s32 16, 16
      %55 = vsyncadd [#allocation9], %s54
      %s57 = sshll.u32 [#allocation8], 4
      %s58 = int_to_ptr.vmem [resolvable:$true] %s57
      %60 = dma.hbm_to_vmem [thread:$0]  %s3, 16, %s58, [#allocation9]
    $region17: #{tpu_custom_call.1} parent=1 // pred_fallthru
      _
    // Predicated region
    $region18: #{tpu_custom_call.1} parent=1 // pred_check
      _
    $region19: #{tpu_custom_call.1} parent=1 // pred_check_branch
      %62 = sbr.rel (0) target = $region21
    $region20: #{tpu_custom_call.1} parent=1 // pred_region
      %s64 = ssub.s32 16, 16
      %65 = vsyncadd [#allocation9], %s64
      %s67 = sshll.u32 [#allocation10], 4
      %s68 = int_to_ptr.vmem [resolvable:$true] %s67
      %70 = dma.hbm_to_vmem [thread:$0]  %s4, 16, %s68, [#allocation9]
    $region21: #{tpu_custom_call.1} parent=1 // pred_fallthru
      _
    // Predicated region
    $region22: #{tpu_custom_call.1} parent=1 // pred_check
      _
    $region23: #{tpu_custom_call.1} parent=1 // pred_check_branch
      %72 = sbr.rel (0) target = $region25
    $region24: #{tpu_custom_call.1} parent=1 // pred_region
      %s74 = ssub.s32 512, 512
      %75 = vsyncadd [#allocation12], %s74
      %s76 = sshll.u32 [#allocation11], 4
      %s77 = int_to_ptr.vmem [resolvable:$true] %s76
      %82 = dma.hbm_to_vmem [thread:$0]  %s5, 512, %s77, [#allocation12], 128, 128, 8
    $region25: #{tpu_custom_call.1} parent=1 // pred_fallthru
      _
    // Predicated region
    $region26: #{tpu_custom_call.1} parent=1 // pred_check
      _
    $region27: #{tpu_custom_call.1} parent=1 // pred_check_branch
      %84 = sbr.rel (0) target = $region29
    $region28: #{tpu_custom_call.1} parent=1 // pred_region
      %s86 = ssub.s32 16, 16
      %87 = vsyncadd [#allocation12], %s86
      %s89 = sshll.u32 [#allocation13], 4
      %s90 = int_to_ptr.vmem [resolvable:$true] %s89
      %92 = dma.hbm_to_vmem [thread:$0]  %s6, 16, %s90, [#allocation12]
    $region29: #{tpu_custom_call.1} parent=1 // pred_fallthru
      _
    // Predicated region
    $region30: #{tpu_custom_call.1} parent=1 // pred_check
      _
    $region31: #{tpu_custom_call.1} parent=1 // pred_check_branch
      %94 = sbr.rel (0) target = $region33
    $region32: #{tpu_custom_call.1} parent=1 // pred_region
      %95 = dma.done [#allocation3], 384
    $region33: #{tpu_custom_call.1} parent=1 // pred_fallthru
      _
    // Predicated region
    $region34: #{tpu_custom_call.1} parent=1 // pred_check
      _
    $region35: #{tpu_custom_call.1} parent=1 // pred_check_branch
      %97 = sbr.rel (0) target = $region37
    $region36: #{tpu_custom_call.1} parent=1 // pred_region
      %98 = dma.done [#allocation6], 1536
    $region37: #{tpu_custom_call.1} parent=1 // pred_fallthru
      _
    // Predicated region
    $region38: #{tpu_custom_call.1} parent=1 // pred_check
      _
    $region39: #{tpu_custom_call.1} parent=1 // pred_check_branch
      %100 = sbr.rel (0) target = $region41
    $region40: #{tpu_custom_call.1} parent=1 // pred_region
      %101 = dma.done [#allocation6], 16
    $region41: #{tpu_custom_call.1} parent=1 // pred_fallthru
      _
    // Predicated region
    $region42: #{tpu_custom_call.1} parent=1 // pred_check
      _
    $region43: #{tpu_custom_call.1} parent=1 // pred_check_branch
      %103 = sbr.rel (0) target = $region45
    $region44: #{tpu_custom_call.1} parent=1 // pred_region
      %104 = dma.done [#allocation9], 16
    $region45: #{tpu_custom_call.1} parent=1 // pred_fallthru
      _
    // Predicated region
    $region46: #{tpu_custom_call.1} parent=1 // pred_check
      _
    $region47: #{tpu_custom_call.1} parent=1 // pred_check_branch
      %106 = sbr.rel (0) target = $region49
    $region48: #{tpu_custom_call.1} parent=1 // pred_region
      %107 = dma.done [#allocation9], 16
    $region49: #{tpu_custom_call.1} parent=1 // pred_fallthru
      _
    // Predicated region
    $region50: #{tpu_custom_call.1} parent=1 // pred_check
      _
    $region51: #{tpu_custom_call.1} parent=1 // pred_check_branch
      %109 = sbr.rel (0) target = $region53
    $region52: #{tpu_custom_call.1} parent=1 // pred_region
      %110 = dma.done [#allocation12], 512
    $region53: #{tpu_custom_call.1} parent=1 // pred_fallthru
      _
    // Predicated region
    $region54: #{tpu_custom_call.1} parent=1 // pred_check
      _
    $region55: #{tpu_custom_call.1} parent=1 // pred_check_branch
      %112 = sbr.rel (0) target = $region57
    $region56: #{tpu_custom_call.1} parent=1 // pred_region
      %113 = dma.done [#allocation12], 16
    $region57: #{tpu_custom_call.1} parent=1 // pred_fallthru
      _
    %v114 = vld [vmem:[#allocation2] sm:$0xff]
    %v115 = vld [vmem:[#allocation2 + $0x8] sm:$0xff]
    %v116 = vld [vmem:[#allocation2 + $0x10] sm:$0xff]
    %v117 = vld [vmem:[#allocation5] sm:$0xff]
    %v118 = vld [vmem:[#allocation5 + $0x8] sm:$0xff]
    %v119 = vld [vmem:[#allocation5 + $0x10] sm:$0xff]
    %v120 = vld [vmem:[#allocation5 + $0x18] sm:$0xff]
    %v121 = vld [vmem:[#allocation5 + $0x20] sm:$0xff]
    %v122 = vld [vmem:[#allocation5 + $0x28] sm:$0xff]
    %v123 = vld [vmem:[#allocation5 + $0x30] sm:$0xff]
    %v124 = vld [vmem:[#allocation5 + $0x38] sm:$0xff]
    %v125 = vld [vmem:[#allocation5 + $0x40] sm:$0xff]
    %v126 = vld [vmem:[#allocation5 + $0x48] sm:$0xff]
    %v127 = vld [vmem:[#allocation5 + $0x50] sm:$0xff]
    %v128 = vld [vmem:[#allocation5 + $0x58] sm:$0xff]
    %v129 = vld [vmem:[#allocation7] sm:$0x1]
    %v131 = vlaneseq
    %v132 = vshrl.u32 %v131, 7
    %v133 = vsub.s32 0, %v132
    %v134 = vrot.slane %v129, %v133
    %vm136 = vcmask 785408
    %v138 = vsel %vm136, %v114, 0
    %v141 = vsel %vm136, %v115, 0
    %v144 = vsel %vm136, %v116, 0
    %146 = vmatprep.subr.mxu0 0.0
    %147 = vmatpush1.msra.mxu0 %v117
    %148 = vmatprep.subr.mxu0 0.0
    %149 = vmatpush1.msra.mxu0 %v118
    %150 = vmatprep.subr.mxu0 0.0
    %151 = vmatpush1.msra.mxu0 %v119
    %152 = vmatprep.subr.mxu0 0.0
    %153 = vmatpush1.msra.mxu0 %v120
    %154 = vmatprep.subr.mxu0 0.0
    %155 = vmatpush1.msra.mxu0 %v121
    %156 = vmatprep.subr.mxu0 0.0
    %157 = vmatpush1.msra.mxu0 %v122
    %158 = vmatprep.subr.mxu0 0.0
    %159 = vmatpush1.msra.mxu0 %v123
    %160 = vmatprep.subr.mxu0 0.0
    %161 = vmatpush1.msra.mxu0 %v124
    %162 = vmatprep.subr.mxu0 0.0
    %163 = vmatpush1.msra.mxu0 %v125
    %164 = vmatprep.subr.mxu0 0.0
    %165 = vmatpush1.msra.mxu0 %v126
    %166 = vmatprep.subr.mxu0 0.0
    %167 = vmatpush1.msra.mxu0 %v127
    %168 = vmatprep.subr.mxu0 0.0
    %169 = vmatpush1.msra.mxu0 %v128
    %170 = vmatprep.subr.mxu0 0.0
    %171 = vmatpush1.msra.mxu0 0.0
    %172 = vmatprep.subr.mxu0 0.0
    %173 = vmatpush1.msra.mxu0 0.0
    %174 = vmatprep.subr.mxu0 0.0
    %175 = vmatpush1.msra.mxu0 0.0
    %176 = vmatprep.subr.mxu0 0.0
    %177 = vmatpush1.msra.mxu0 0.0
    %178 = vmatprep.subr.mxu0 0.0
    %179 = vmatpush1.msra.mxu0 0.0
    %180 = vmatprep.subr.mxu0 0.0
    %181 = vmatpush1.msra.mxu0 0.0
    %182 = vmatprep.subr.mxu0 0.0
    %183 = vmatpush1.msra.mxu0 0.0
    %184 = vmatprep.subr.mxu0 0.0
    %185 = vmatpush1.msra.mxu0 0.0
    %186 = vmatprep.subr.mxu0 0.0
    %187 = vmatpush1.msra.mxu0 0.0
    %188 = vmatprep.subr.mxu0 0.0
    %189 = vmatpush1.msra.mxu0 0.0
    %190 = vmatprep.subr.mxu0 0.0
    %191 = vmatpush1.msra.mxu0 0.0
    %192 = vmatprep.subr.mxu0 0.0
    %193 = vmatpush1.msra.mxu0 0.0
    %194 = vmatprep.subr.mxu0 0.0
    %195 = vmatpush1.msra.mxu0 0.0
    %196 = vmatprep.subr.mxu0 0.0
    %197 = vmatpush1.msra.mxu0 0.0
    %198 = vmatprep.subr.mxu0 0.0
    %199 = vmatpush1.msra.mxu0 0.0
    %200 = vmatprep.subr.mxu0 0.0
    %201 = vmatpush1.msra.mxu0 0.0
    %202 = vmatprep.subr.mxu0 0.0
    %203 = vmatpush1.msra.mxu0 0.0
    %204 = vmatprep.subr.mxu0 0.0
    %205 = vmatpush1.msra.mxu0 0.0
    %206 = vmatprep.subr.mxu0 0.0
    %207 = vmatpush1.msra.mxu0 0.0
    %208 = vmatprep.subr.mxu0 0.0
    %209 = vmatpush1.msra.mxu0 0.0
    %210 = vmatprep.mubr.f32.mxu0 0.0
    %211 = vmatmul.mubr.f32.gmra.mrb[0].mxu0 %v138
    %v212 = vpop.f32.mrb[0].mxu0
    %v213 = vadd.f32 %v134, %v212
    %v214 = vpop.f32.mrb[0].mxu0
    %215 = vmatprep.mubr.f32.mxu0 0.0
    %216 = vmatmul.mubr.f32.gmra.mrb[0].mxu0 %v141
    %v217 = vpop.f32.mrb[0].mxu0
    %v218 = vadd.f32 %v134, %v217
    %v219 = vpop.f32.mrb[0].mxu0
    %220 = vmatprep.mubr.f32.mxu0 0.0
    %221 = vmatmul.mubr.f32.gmra.mrb[0].mxu0 %v144
    %v222 = vpop.f32.mrb[0].mxu0
    %v223 = vadd.f32 %v134, %v222
    %v224 = vpop.f32.mrb[0].mxu0
    %225 = vdwg.mxu0
    %v226 = vld [vmem:[#allocation8] sm:$0x1]
    %v227 = vld [vmem:[#allocation10] sm:$0x1]
    %vm228 = vcmask 261120
    %v229 = vsel %vm228, %v213, 0.0
    %230 = vadd.xlane.f32.xlu0 %v229
    %v231 = vpop.xlane.xlu0 %230
    %v232 = vsel %vm228, %v218, 0.0
    %233 = vadd.xlane.f32.xlu0 %v232
    %v234 = vpop.xlane.xlu0 %233
    %v235 = vsel %vm228, %v223, 0.0
    %236 = vadd.xlane.f32.xlu0 %v235
    %v237 = vpop.xlane.xlu0 %236
    %v238 = vrcp.pop 32.0
    %v239 = vmul.f32 %v231, %v238
    %v240 = vmul.f32 %v234, %v238
    %v241 = vmul.f32 %v237, %v238
    %v242 = vsub.f32 %v213, %v239
    %v243 = vsub.f32 %v218, %v240
    %v244 = vsub.f32 %v223, %v241
    %v245 = vmul.f32 %v242, %v242
    %v246 = vmul.f32 %v243, %v243
    %v247 = vmul.f32 %v244, %v244
    %v248 = vsel %vm228, %v245, 0.0
    %249 = vadd.xlane.f32.xlu0 %v248
    %v250 = vpop.xlane.xlu0 %249
    %v251 = vsel %vm228, %v246, 0.0
    %252 = vadd.xlane.f32.xlu0 %v251
    %v253 = vpop.xlane.xlu0 %252
    %v254 = vsel %vm228, %v247, 0.0
    %255 = vadd.xlane.f32.xlu0 %v254
    %v256 = vpop.xlane.xlu0 %255
    %v257 = vmul.f32 %v250, %v238
    %v258 = vmul.f32 %v253, %v238
    %v259 = vmul.f32 %v256, %v238
    %v260 = vadd.f32 %v257, 1e-05
    %v261 = vadd.f32 %v258, 1e-05
    %v262 = vadd.f32 %v259, 1e-05
    %v263 = vrsqrt.pop %v260
    %v264 = vrsqrt.pop %v261
    %v265 = vrsqrt.pop %v262
    %v266 = vmul.f32 %v242, %v263
    %v267 = vmul.f32 %v243, %v264
    %v268 = vmul.f32 %v244, %v265
    %v270 = vlaneseq
    %v271 = vshrl.u32 %v270, 7
    %v272 = vsub.s32 0, %v271
    %v273 = vrot.slane %v226, %v272
    %v275 = vmul.f32 %v266, %v273
    %v276 = vmul.f32 %v267, %v273
    %v277 = vmul.f32 %v268, %v273
    %v279 = vlaneseq
    %v280 = vshrl.u32 %v279, 7
    %v281 = vsub.s32 0, %v280
    %v282 = vrot.slane %v227, %v281
    %v284 = vadd.f32 %v275, %v282
    %v285 = vadd.f32 %v276, %v282
    %v286 = vadd.f32 %v277, %v282
    %v287 = vmax.f32 %v284, 0.0
    %v288 = vmax.f32 %v285, 0.0
    %v289 = vmax.f32 %v286, 0.0
    %v290 = vld [vmem:[#allocation11] sm:$0xff]
    %v291 = vld [vmem:[#allocation11 + $0x8] sm:$0xff]
    %v292 = vld [vmem:[#allocation11 + $0x10] sm:$0xff]
    %v293 = vld [vmem:[#allocation11 + $0x18] sm:$0xff]
    %v294 = vld [vmem:[#allocation13] sm:$0x1]
    %v296 = vlaneseq
    %v297 = vshrl.u32 %v296, 7
    %v298 = vsub.s32 0, %v297
    %v299 = vrot.slane %v294, %v298
    %v302 = vsel %vm228, %v287, 0
    %v305 = vsel %vm228, %v288, 0
    %v308 = vsel %vm228, %v289, 0
    %310 = vmatprep.subr.mxu0 0.0
    %311 = vmatpush1.msra.mxu0 %v290
    %312 = vmatprep.subr.mxu0 0.0
    %313 = vmatpush1.msra.mxu0 %v291
    %314 = vmatprep.subr.mxu0 0.0
    %315 = vmatpush1.msra.mxu0 %v292
    %316 = vmatprep.subr.mxu0 0.0
    %317 = vmatpush1.msra.mxu0 %v293
    %318 = vmatprep.subr.mxu0 0.0
    %319 = vmatpush1.msra.mxu0 0.0
    %320 = vmatprep.subr.mxu0 0.0
    %321 = vmatpush1.msra.mxu0 0.0
    %322 = vmatprep.subr.mxu0 0.0
    %323 = vmatpush1.msra.mxu0 0.0
    %324 = vmatprep.subr.mxu0 0.0
    %325 = vmatpush1.msra.mxu0 0.0
    %326 = vmatprep.subr.mxu0 0.0
    %327 = vmatpush1.msra.mxu0 0.0
    %328 = vmatprep.subr.mxu0 0.0
    %329 = vmatpush1.msra.mxu0 0.0
    %330 = vmatprep.subr.mxu0 0.0
    %331 = vmatpush1.msra.mxu0 0.0
    %332 = vmatprep.subr.mxu0 0.0
    %333 = vmatpush1.msra.mxu0 0.0
    %334 = vmatprep.subr.mxu0 0.0
    %335 = vmatpush1.msra.mxu0 0.0
    %336 = vmatprep.subr.mxu0 0.0
    %337 = vmatpush1.msra.mxu0 0.0
    %338 = vmatprep.subr.mxu0 0.0
    %339 = vmatpush1.msra.mxu0 0.0
    %340 = vmatprep.subr.mxu0 0.0
    %341 = vmatpush1.msra.mxu0 0.0
    %342 = vmatprep.subr.mxu0 0.0
    %343 = vmatpush1.msra.mxu0 0.0
    %344 = vmatprep.subr.mxu0 0.0
    %345 = vmatpush1.msra.mxu0 0.0
    %346 = vmatprep.subr.mxu0 0.0
    %347 = vmatpush1.msra.mxu0 0.0
    %348 = vmatprep.subr.mxu0 0.0
    %349 = vmatpush1.msra.mxu0 0.0
    %350 = vmatprep.subr.mxu0 0.0
    %351 = vmatpush1.msra.mxu0 0.0
    %352 = vmatprep.subr.mxu0 0.0
    %353 = vmatpush1.msra.mxu0 0.0
    %354 = vmatprep.subr.mxu0 0.0
    %355 = vmatpush1.msra.mxu0 0.0
    %356 = vmatprep.subr.mxu0 0.0
    %357 = vmatpush1.msra.mxu0 0.0
    %358 = vmatprep.subr.mxu0 0.0
    %359 = vmatpush1.msra.mxu0 0.0
    %360 = vmatprep.subr.mxu0 0.0
    %361 = vmatpush1.msra.mxu0 0.0
    %362 = vmatprep.subr.mxu0 0.0
    %363 = vmatpush1.msra.mxu0 0.0
    %364 = vmatprep.subr.mxu0 0.0
    %365 = vmatpush1.msra.mxu0 0.0
    %366 = vmatprep.subr.mxu0 0.0
    %367 = vmatpush1.msra.mxu0 0.0
    %368 = vmatprep.subr.mxu0 0.0
    %369 = vmatpush1.msra.mxu0 0.0
    %370 = vmatprep.subr.mxu0 0.0
    %371 = vmatpush1.msra.mxu0 0.0
    %372 = vmatprep.subr.mxu0 0.0
    %373 = vmatpush1.msra.mxu0 0.0
    %374 = vmatprep.mubr.f32.mxu0 0.0
    %375 = vmatmul.mubr.f32.gmra.mrb[0].mxu0 %v302
    %v376 = vpop.f32.mrb[0].mxu0
    %v377 = vadd.f32 %v299, %v376
    %v378 = vpop.f32.mrb[0].mxu0
    %379 = vmatprep.mubr.f32.mxu0 0.0
    %380 = vmatmul.mubr.f32.gmra.mrb[0].mxu0 %v305
    %v381 = vpop.f32.mrb[0].mxu0
    %v382 = vadd.f32 %v299, %v381
    %v383 = vpop.f32.mrb[0].mxu0
    %384 = vmatprep.mubr.f32.mxu0 0.0
    %385 = vmatmul.mubr.f32.gmra.mrb[0].mxu0 %v308
    %v386 = vpop.f32.mrb[0].mxu0
    %v387 = vadd.f32 %v299, %v386
    %v388 = vpop.f32.mrb[0].mxu0
    %389 = vdwg.mxu0
    %390 = vst.msk [vmem:[#allocation14] sm:$0xff] %vm228, %v377
    %391 = vst.msk [vmem:[#allocation14 + $0x8] sm:$0xff] %vm228, %v382
    %392 = vst.msk [vmem:[#allocation14 + $0x10] sm:$0xff] %vm228, %v387
    // Predicated region
    $region58: #{tpu_custom_call.1} parent=1 // pred_check
      _
    $region59: #{tpu_custom_call.1} parent=1 // pred_check_branch
      %394 = sbr.rel (0) target = $region61
    $region60: #{tpu_custom_call.1} parent=1 // pred_region
      %s396 = ssub.s32 384, 384
      %397 = vsyncadd [#allocation4], %s396
      %s398 = sshll.u32 [#allocation14], 4
      %s399 = int_to_ptr.vmem [resolvable:$true] %s398
      %404 = dma.vmem_to_hbm [thread:$0]  %s399, 384, %s7, [#allocation4], 128, 128, 8
    $region61: #{tpu_custom_call.1} parent=1 // pred_fallthru
      _
    // Predicated region
    $region62: #{tpu_custom_call.1} parent=1 // pred_check
      _
    $region63: #{tpu_custom_call.1} parent=1 // pred_check_branch
      %406 = sbr.rel (0) target = $region65
    $region64: #{tpu_custom_call.1} parent=1 // pred_region
      %407 = dma.done [#allocation4], 384
    $region65: #{tpu_custom_call.1} parent=1 // pred_fallthru
      _
    %408 = vsyncpa [#allocation3], 1
    %409 = vsyncpa [#allocation6], 1
    %410 = vsyncpa [#allocation9], 1
    %411 = vsyncpa [#allocation12], 1
    %412 = vsyncpa [#allocation4], 1

</llo_original>
